<compile_context>
chip_gen: v7x
topology: tpu7x:2x2x1
jax: 0.10.0
libtpu: 0.0.40
codegen_flags: <defaults>
</compile_context>

<pallas_src>
import jax
import jax.numpy as jnp
from jax.experimental import pallas as pl
from jax.experimental.pallas import tpu as pltpu

EPS = 1e-5
LANE = 128


# --------------------------------------------------------------------------- #
# small helpers
# --------------------------------------------------------------------------- #
def _round_up(v, m):
    return ((v + m - 1) // m) * m


def _divisor_tiles(hp):
    """Multiples of 128 that divide hp, descending."""
    return [t for t in range(hp, 0, -LANE) if hp % t == 0]


def _vmem_budget_bytes():
    """Per-generation VMEM budget for the double-buffered working set."""
    try:
        kind = jax.devices()[0].device_kind.lower()
    except Exception:  # pragma: no cover - defensive
        kind = ""
    if "v5" in kind or "v6" in kind:
        return 88 << 20          # 128 MiB physical VMEM on v5e / v6e
    return 44 << 20              # v7x: 64 MiB per TensorCore -> stay <= ~48 MiB


def _collapsed_usage(bp, hp, tn, mm_bytes):
    xk = 2 * bp * hp * mm_bytes       # packed matmul x planes (index constant over j)
    w = 2 * hp * tn * mm_bytes        # packed W^T planes, full contraction
    vec = 16 * tn * 4                 # packed bias / norm params
    xj = 2 * bp * tn * 4              # residual x planes
    out = 2 * bp * tn * 4             # packed output planes
    return 2 * (xk + w + vec + xj + out)          # everything double-buffered


def _tiled_usage(bp, hp, tn, tk, mm_bytes):
    xk = 2 * bp * tk * mm_bytes
    w = 2 * tk * tn * mm_bytes
    vec = 16 * tn * 4
    xj = 2 * bp * tn * 4
    out = 2 * bp * tn * 4
    acc = 2 * bp * tn * 4                          # scratch accumulator (single copy)
    return 2 * (xk + w + vec + xj + out) + acc


def _select_tiles(bp, hp, budget, mm_bytes):
    tiles = _divisor_tiles(hp)
    # Preferred: collapse the contraction axis (1-D grid over j, no accumulator,
    # no pl.when).  Among fitting tile sizes prefer one that leaves >= 2 j-tiles
    # so v7x's second TensorCore gets work and weight DMA overlaps compute.
    fitting = [t for t in tiles if _collapsed_usage(bp, hp, t, mm_bytes) <= budget]
    if fitting:
        multi = [t for t in fitting if hp // t >= 2]
        return (multi[0] if multi else fitting[0]), hp
    # Fallback: 2-D (j, k) tiling with an f32 accumulator (very large Bp * Hp).
    for tn in tiles:
        for tk in tiles:
            if _tiled_usage(bp, hp, tn, tk, mm_bytes) <= budget:
                return tn, tk
    return LANE, LANE


# --------------------------------------------------------------------------- #
# in-kernel math
# --------------------------------------------------------------------------- #
def _complex_norm(zr, zi, gr, gi, br, bi, row_mask, inv_b):
    """ComplexNorm over the batch (sublane) axis with a complex affine:
       g * (z - mean) / sqrt(E|z - mean|^2 + eps) + b."""
    if row_mask is None:
        sr = jnp.sum(zr, axis=0, keepdims=True)
        si = jnp.sum(zi, axis=0, keepdims=True)
    else:
        sr = jnp.sum(zr * row_mask, axis=0, keepdims=True)
        si = jnp.sum(zi * row_mask, axis=0, keepdims=True)
    mr = sr * inv_b
    mi = si * inv_b
    dr = zr - mr
    di = zi - mi
    sq = dr * dr + di * di
    if row_mask is not None:
        sq = sq * row_mask
    var = jnp.sum(sq, axis=0, keepdims=True) * inv_b
    inv = jax.lax.rsqrt(var + EPS)              # real 1/sqrt(var + eps)
    nr = dr * inv
    ni = di * inv
    # (gr + i gi) * (nr + i ni) + (br + i bi)
    return gr * nr - gi * ni + br, gr * ni + gi * nr + bi


def _complex_tanh(hr, hi):
    """Numerically stable complex tanh:
    tanh(a+ib) = (sinh 2a + i sin 2b) / (cosh 2a + cos 2b), rescaled by
    2 e^{-2|a|} so nothing overflows for large |a|.  Exact division (not the
    approximate EUP reciprocal): the denominator can get small near the
    genuine tanh poles."""
    a2 = 2.0 * hr
    b2 = 2.0 * hi
    sgn = jnp.where(a2 >= 0.0, 1.0, -1.0)
    t = jnp.exp(-jnp.abs(a2))                   # in (0, 1]
    t2 = t * t
    denom = 1.0 + t2 + 2.0 * t * jnp.cos(b2)    # = 2 e^{-2|a|} (cosh 2a + cos 2b)
    inv_d = 1.0 / denom
    return sgn * (1.0 - t2) * inv_d, (2.0 * t) * jnp.sin(b2) * inv_d


def _epilogue(hr, hi, vec, xjr, xji, batch, batch_padded, inv_b):
    """bias + ComplexNorm1 + complex tanh + residual add + ComplexNorm2.
    `vec` rows: 0 b_re, 1 b_im, 2 g1_re, 3 g1_im, 4 c1_re, 5 c1_im,
                6 g2_re, 7 g2_im, 8 c2_re, 9 c2_im."""
    if batch_padded != batch:
        rows = jax.lax.broadcasted_iota(jnp.int32, hr.shape, 0)
        row_mask = (rows < batch).astype(jnp.float32)
    else:
        row_mask = None

    hr = hr + vec[0:1]
    hi = hi + vec[1:2]
    hr, hi = _complex_norm(hr, hi, vec[2:3], vec[3:4], vec[4:5], vec[5:6],
                           row_mask, inv_b)
    tr, ti = _complex_tanh(hr, hi)
    rr = xjr + tr
    ri = xji + ti
    return _complex_norm(rr, ri, vec[6:7], vec[7:8], vec[8:9], vec[9:10],
                         row_mask, inv_b)


# --------------------------------------------------------------------------- #
# kernels
# --------------------------------------------------------------------------- #
def _make_collapsed_kernel(batch, batch_padded):
    """1-D grid over output-feature tiles; whole contraction in one step
    (no accumulator scratch, no pl.when)."""
    inv_b = 1.0 / batch

    def kernel(xk_ref, w_ref, vec_ref, xj_ref, o_ref):
        ar = xk_ref[0]                          # (Bp, Hp) bf16
        ai = xk_ref[1]
        cr = w_ref[0]                           # (Hp, tn) bf16
        ci = w_ref[1]
        # Plain 4-matmul complex product: in the HBM-bound regime the MXU has
        # slack, and this avoids the Gauss (t3 - t1 - t2) cancellation.
        hr = (jnp.dot(ar, cr, preferred_element_type=jnp.float32)
              - jnp.dot(ai, ci, preferred_element_type=jnp.float32))
        hi = (jnp.dot(ar, ci, preferred_element_type=jnp.float32)
              + jnp.dot(ai, cr, preferred_element_type=jnp.float32))
        orr, ori = _epilogue(hr, hi, vec_ref[...], xj_ref[0], xj_ref[1],
                             batch, batch_padded, inv_b)
        o_ref[0] = orr
        o_ref[1] = ori

    return kernel


def _make_tiled_kernel(batch, batch_padded):
    """2-D grid (feature tiles x contraction tiles) with an f32 accumulator;
    epilogue fused into the last contraction step of each feature tile."""
    inv_b = 1.0 / batch

    def kernel(xk_ref, w_ref, vec_ref, xj_ref, o_ref, acc_ref):
        k = pl.program_id(1)

        @pl.when(k == 0)
        def _():
            acc_ref[...] = jnp.zeros_like(acc_ref)

        ar = xk_ref[0]                          # (Bp, tk) bf16
        ai = xk_ref[1]
        cr = w_ref[0]                           # (tk, tn) bf16
        ci = w_ref[1]
        acc_ref[0] += (jnp.dot(ar, cr, preferred_element_type=jnp.float32)
                       - jnp.dot(ai, ci, preferred_element_type=jnp.float32))
        acc_ref[1] += (jnp.dot(ar, ci, preferred_element_type=jnp.float32)
                       + jnp.dot(ai, cr, preferred_element_type=jnp.float32))

        @pl.when(k == pl.num_programs(1) - 1)
        def _():
            orr, ori = _epilogue(acc_ref[0], acc_ref[1], vec_ref[...],
                                 xj_ref[0], xj_ref[1],
                                 batch, batch_padded, inv_b)
            o_ref[0] = orr
            o_ref[1] = ori

    return kernel


# --------------------------------------------------------------------------- #
# host-side wrappers
# --------------------------------------------------------------------------- #
def prepare_params(params, *, matmul_dtype=jnp.bfloat16):
    """Hoisted parameter preprocessing (run once per weight update):
    transpose W, split/pad/pack real+imag planes (bf16 for the MXU), and pack
    the 10 bias/norm vectors into a single (16, Hp) f32 array."""
    H = params["W"].shape[0]
    Hp = _round_up(max(H, LANE), LANE)

    wt = jnp.transpose(params["W"])                      # (H_in, H_out) = W^T

    def pad_plane(a):
        return jnp.pad(a.astype(jnp.float32), ((0, Hp - H), (0, Hp - H)))

    w_planes = jnp.stack([pad_plane(jnp.real(wt)),
                          pad_plane(jnp.imag(wt))]).astype(matmul_dtype)  # (2,Hp,Hp)

    def pad_vec(a):
        return jnp.pad(a.astype(jnp.float32), (0, Hp - H))

    rows = []
    for name in ("b", "g1", "c1", "g2", "c2"):
        rows.append(pad_vec(jnp.real(params[name])))
        rows.append(pad_vec(jnp.imag(params[name])))
    vec = jnp.stack(rows)                                # (10, Hp)
    vec = jnp.pad(vec, ((0, 16 - vec.shape[0]), (0, 0))) # (16, Hp) f32

    return dict(H=H, Hp=Hp, w_planes=w_planes, vec=vec, matmul_dtype=matmul_dtype)


def residual_block(x, prep, *, tile_n=None, tile_k=None):
    """x: complex64 (B, H).  prep: output of prepare_params.  -> complex64 (B, H)."""
    B, H = x.shape
    assert H == prep["H"]
    Hp = prep["Hp"]
    Bp = _round_up(max(B, 8), 8)
    mm_dtype = prep["matmul_dtype"]
    mm_bytes = jnp.dtype(mm_dtype).itemsize

    xr = jnp.pad(jnp.real(x).astype(jnp.float32), ((0, Bp - B), (0, Hp - H)))
    xi = jnp.pad(jnp.imag(x).astype(jnp.float32), ((0, Bp - B), (0, Hp - H)))
    x_res = jnp.stack([xr, xi])                 # (2, Bp, Hp) f32  (residual path)
    x_mm = x_res.astype(mm_dtype)               # (2, Bp, Hp) bf16 (MXU operands)

    budget = _vmem_budget_bytes()
    if tile_n is None and tile_k is None:
        tn, tk = _select_tiles(Bp, Hp, budget, mm_bytes)
    else:
        tn = tile_n if tile_n is not None else Hp
        tk = tile_k if tile_k is not None else Hp
    assert Hp % tn == 0 and Hp % tk == 0 and tn % LANE == 0 and tk % LANE == 0
    collapsed = (tk == Hp)

    if collapsed:
        kernel = _make_collapsed_kernel(B, Bp)
        grid = (Hp // tn,)
        in_specs = [
            pl.BlockSpec((2, Bp, Hp), lambda j: (0, 0, 0)),   # x (matmul, bf16)
            pl.BlockSpec((2, Hp, tn), lambda j: (0, 0, j)),   # W^T planes (bf16)
            pl.BlockSpec((16, tn),    lambda j: (0, j)),      # packed bias / norm
            pl.BlockSpec((2, Bp, tn), lambda j: (0, 0, j)),   # x (residual, f32)
        ]
        out_specs = pl.BlockSpec((2, Bp, tn), lambda j: (0, 0, j))
        scratch_shapes = []
        dims = ("parallel",)
        usage = _collapsed_usage(Bp, Hp, tn, mm_bytes)
    else:
        kernel = _make_tiled_kernel(B, Bp)
        grid = (Hp // tn, Hp // tk)
        in_specs = [
            pl.BlockSpec((2, Bp, tk), lambda j, k: (0, 0, k)),
            pl.BlockSpec((2, tk, tn), lambda j, k: (0, k, j)),
            pl.BlockSpec((16, tn),    lambda j, k: (0, j)),
            pl.BlockSpec((2, Bp, tn), lambda j, k: (0, 0, j)),
        ]
        out_specs = pl.BlockSpec((2, Bp, tn), lambda j, k: (0, 0, j))
        scratch_shapes = [pltpu.VMEM((2, Bp, tn), jnp.float32)]
        dims = ("parallel", "arbitrary")
        usage = _tiled_usage(Bp, Hp, tn, tk, mm_bytes)

    vmem_limit = int(max(usage + (16 << 20), 32 << 20))

    num_j = Hp // tn
    flops = 4 * 2 * Bp * Hp * Hp                         # four real matmuls
    transcendentals = 4 * Bp * Hp                        # exp + sin + cos + div
    bytes_accessed = int(
        2 * Bp * Hp * mm_bytes * (1 if collapsed else num_j)  # bf16 x (re-read/j tile)
        + 2 * Hp * Hp * mm_bytes                              # bf16 weight planes
        + 16 * Hp * 4                                         # packed bias / norm
        + 2 * Bp * Hp * 4                                     # f32 residual x
        + 2 * Bp * Hp * 4)                                    # f32 outputs

    out = pl.pallas_call(
        kernel,
        out_shape=jax.ShapeDtypeStruct((2, Bp, Hp), jnp.float32),
        grid_spec=pltpu.PrefetchScalarGridSpec(
            num_scalar_prefetch=0,
            grid=grid,
            in_specs=in_specs,
            out_specs=out_specs,
            scratch_shapes=scratch_shapes),
        compiler_params=pltpu.CompilerParams(
            dimension_semantics=dims,
            vmem_limit_bytes=vmem_limit),
        cost_estimate=pl.CostEstimate(flops=flops,
                                      transcendentals=transcendentals,
                                      bytes_accessed=bytes_accessed),
    )(x_mm, prep["w_planes"], prep["vec"], x_res)

    return (out[0, :B, :H] + 1j * out[1, :B, :H]).astype(jnp.complex64)


# --------------------------------------------------------------------------- #
# reference + self-test
# --------------------------------------------------------------------------- #
def ref_forward(x, params):
    """Pure-JAX complex64 reference matching the PyTorch module semantics."""
    def cnorm(z, g, c):
        mean = jnp.mean(z, axis=0, keepdims=True)
        var = jnp.mean(jnp.abs(z - mean) ** 2, axis=0, keepdims=True)
        zn = (z - mean) / jnp.sqrt(var + EPS)
        return g[None, :] * zn + c[None, :]

    h = x @ params["W"].T + params["b"][None, :]
    h = cnorm(h, params["g1"], params["c1"])
    h = jnp.tanh(h)
    return cnorm(x + h, params["g2"], params["c2"])


def _make_example(key, B, H):
    keys = jax.random.split(key, 14)

    def cplx(kr, ki, shape, scale=1.0):
        return ((jax.random.normal(kr, shape, jnp.float32)
                 + 1j * jax.random.normal(ki, shape, jnp.float32)) * scale
                ).astype(jnp.complex64)

    x = cplx(keys[0], keys[1], (B, H))
    scale = 1.0 / float(H) ** 0.5
    params = {
        "W": cplx(keys[2], keys[3], (H, H), scale),
        "b": cplx(keys[4], keys[5], (H,), scale),
        # Non-trivial affine parameters.  g1 is kept small so the tanh argument
        # stays well away from the tanh poles at Im = (k + 1/2) * pi, where any
        # operand rounding (bf16 MXU) would be unboundedly amplified — matching
        # the magnitudes a trained block would actually use.
        "g1": (0.3 * jnp.ones((H,)) + cplx(keys[6], keys[7], (H,), 0.05)
               ).astype(jnp.complex64),
        "c1": cplx(keys[8], keys[9], (H,), 0.05),
        "g2": (jnp.ones((H,)) + cplx(keys[10], keys[11], (H,), 0.1)
               ).astype(jnp.complex64),
        "c2": cplx(keys[12], keys[13], (H,), 0.1),
    }
    return x, params


if __name__ == "__main__":
    key = jax.random.PRNGKey(0)
    k1, k2 = jax.random.split(key)

    # 1) Small shape -> collapsed-k fast path (1-D grid, no accumulator).
    x1, p1 = _make_example(k1, 8, 32)
    prep1 = prepare_params(p1)
    out1 = jax.block_until_ready(residual_block(x1, prep1))
    ref1 = ref_forward(x1, p1)
    assert out1.shape == (8, 32) and out1.dtype == jnp.complex64
    assert jnp.allclose(out1, ref1, rtol=3e-2, atol=3e-2), (
        "collapsed-path mismatch: max err "
        f"{float(jnp.max(jnp.abs(out1 - ref1)))}")

    # 2) Padded batch + forced 2-D (j, k) tiling to exercise the accumulator path.
    x2, p2 = _make_example(k2, 12, 256)
    prep2 = prepare_params(p2)
    out2 = jax.block_until_ready(residual_block(x2, prep2, tile_n=128, tile_k=128))
    ref2 = ref_forward(x2, p2)
    assert out2.shape == (12, 256) and out2.dtype == jnp.complex64
    assert jnp.allclose(out2, ref2, rtol=3e-2, atol=3e-2), (
        "tiled-path mismatch: max err "
        f"{float(jnp.max(jnp.abs(out2 - ref2)))}")

    print("KERNEL_OK")
</pallas_src>

<mosaic_0001>
module attributes {stable_mosaic.version = 11 : i64} {
  func.func @kernel(%arg0: i32, %arg1: memref<2x8x128xbf16, #tpu.memory_space<vmem>>, %arg2: memref<2x128x128xbf16, #tpu.memory_space<vmem>>, %arg3: memref<16x128xf32, #tpu.memory_space<vmem>>, %arg4: memref<2x8x128xf32, #tpu.memory_space<vmem>>, %arg5: memref<2x8x128xf32, #tpu.memory_space<vmem>>) attributes {dimension_semantics = [#tpu.dimension_semantics<parallel>], iteration_bounds = array<i64: 1>, scalar_prefetch = 0 : i64, scratch_operands = 0 : i64, tpu.core_type = #tpu.core_type<tc>, window_params = [{pipeline_mode = #tpu.pipeline_mode<synchronous>, transform_indices = @transform_0, window_bounds = array<i64: 2, 8, 128>}, {transform_indices = @transform_1, window_bounds = array<i64: 2, 128, 128>}, {transform_indices = @transform_2, window_bounds = array<i64: 16, 128>}, {transform_indices = @transform_3, window_bounds = array<i64: 2, 8, 128>}, {transform_indices = @transform_4, window_bounds = array<i64: 2, 8, 128>}]} {
    %c0 = arith.constant 0 : index
    %c0_0 = arith.constant 0 : index
    %c0_1 = arith.constant 0 : index
    %0 = vector.load %arg1[%c0, %c0_0, %c0_1] : memref<2x8x128xbf16, #tpu.memory_space<vmem>>, vector<1x8x128xbf16>
    %1 = vector.shape_cast %0 : vector<1x8x128xbf16> to vector<8x128xbf16>
    %c1 = arith.constant 1 : index
    %c0_2 = arith.constant 0 : index
    %c0_3 = arith.constant 0 : index
    %2 = vector.load %arg1[%c1, %c0_2, %c0_3] : memref<2x8x128xbf16, #tpu.memory_space<vmem>>, vector<1x8x128xbf16>
    %3 = vector.shape_cast %2 : vector<1x8x128xbf16> to vector<8x128xbf16>
    %c0_4 = arith.constant 0 : index
    %c0_5 = arith.constant 0 : index
    %c0_6 = arith.constant 0 : index
    %4 = vector.load %arg2[%c0_4, %c0_5, %c0_6] : memref<2x128x128xbf16, #tpu.memory_space<vmem>>, vector<1x128x128xbf16>
    %5 = vector.shape_cast %4 : vector<1x128x128xbf16> to vector<128x128xbf16>
    %c1_7 = arith.constant 1 : index
    %c0_8 = arith.constant 0 : index
    %c0_9 = arith.constant 0 : index
    %6 = vector.load %arg2[%c1_7, %c0_8, %c0_9] : memref<2x128x128xbf16, #tpu.memory_space<vmem>>, vector<1x128x128xbf16>
    %7 = vector.shape_cast %6 : vector<1x128x128xbf16> to vector<128x128xbf16>
    %cst = arith.constant dense<0.000000e+00> : vector<8x128xf32>
    %8 = tpu.matmul %1, %5, %cst {dimension_numbers = #tpu.dot_dimension_numbers<[1], [0], [0], [1], [0, 0, 1, 1], [], []>} : vector<8x128xbf16>, vector<128x128xbf16>, vector<8x128xf32> -> vector<8x128xf32>
    %cst_10 = arith.constant dense<0.000000e+00> : vector<8x128xf32>
    %9 = tpu.matmul %3, %7, %cst_10 {dimension_numbers = #tpu.dot_dimension_numbers<[1], [0], [0], [1], [0, 0, 1, 1], [], []>} : vector<8x128xbf16>, vector<128x128xbf16>, vector<8x128xf32> -> vector<8x128xf32>
    %10 = arith.subf %8, %9 : vector<8x128xf32>
    %cst_11 = arith.constant dense<0.000000e+00> : vector<8x128xf32>
    %11 = tpu.matmul %1, %7, %cst_11 {dimension_numbers = #tpu.dot_dimension_numbers<[1], [0], [0], [1], [0, 0, 1, 1], [], []>} : vector<8x128xbf16>, vector<128x128xbf16>, vector<8x128xf32> -> vector<8x128xf32>
    %cst_12 = arith.constant dense<0.000000e+00> : vector<8x128xf32>
    %12 = tpu.matmul %3, %5, %cst_12 {dimension_numbers = #tpu.dot_dimension_numbers<[1], [0], [0], [1], [0, 0, 1, 1], [], []>} : vector<8x128xbf16>, vector<128x128xbf16>, vector<8x128xf32> -> vector<8x128xf32>
    %13 = arith.addf %11, %12 : vector<8x128xf32>
    %c0_13 = arith.constant 0 : index
    %c0_14 = arith.constant 0 : index
    %14 = vector.load %arg3[%c0_13, %c0_14] : memref<16x128xf32, #tpu.memory_space<vmem>>, vector<16x128xf32>
    %c0_15 = arith.constant 0 : index
    %c0_16 = arith.constant 0 : index
    %c0_17 = arith.constant 0 : index
    %15 = vector.load %arg4[%c0_15, %c0_16, %c0_17] : memref<2x8x128xf32, #tpu.memory_space<vmem>>, vector<1x8x128xf32>
    %16 = vector.shape_cast %15 : vector<1x8x128xf32> to vector<8x128xf32>
    %c1_18 = arith.constant 1 : index
    %c0_19 = arith.constant 0 : index
    %c0_20 = arith.constant 0 : index
    %17 = vector.load %arg4[%c1_18, %c0_19, %c0_20] : memref<2x8x128xf32, #tpu.memory_space<vmem>>, vector<1x8x128xf32>
    %18 = vector.shape_cast %17 : vector<1x8x128xf32> to vector<8x128xf32>
    %19 = vector.extract_strided_slice %14 {offsets = [0, 0], sizes = [1, 128], strides = [1, 1]} : vector<16x128xf32> to vector<1x128xf32>
    %20 = vector.broadcast %19 : vector<1x128xf32> to vector<8x128xf32>
    %21 = arith.addf %10, %20 : vector<8x128xf32>
    %22 = vector.extract_strided_slice %14 {offsets = [1, 0], sizes = [1, 128], strides = [1, 1]} : vector<16x128xf32> to vector<1x128xf32>
    %23 = vector.broadcast %22 : vector<1x128xf32> to vector<8x128xf32>
    %24 = arith.addf %13, %23 : vector<8x128xf32>
    %25 = vector.extract_strided_slice %14 {offsets = [2, 0], sizes = [1, 128], strides = [1, 1]} : vector<16x128xf32> to vector<1x128xf32>
    %26 = vector.extract_strided_slice %14 {offsets = [3, 0], sizes = [1, 128], strides = [1, 1]} : vector<16x128xf32> to vector<1x128xf32>
    %27 = vector.extract_strided_slice %14 {offsets = [4, 0], sizes = [1, 128], strides = [1, 1]} : vector<16x128xf32> to vector<1x128xf32>
    %28 = vector.extract_strided_slice %14 {offsets = [5, 0], sizes = [1, 128], strides = [1, 1]} : vector<16x128xf32> to vector<1x128xf32>
    %cst_21 = arith.constant dense<0.000000e+00> : vector<128xf32>
    %29 = vector.multi_reduction <add>, %21, %cst_21 [0] : vector<8x128xf32> to vector<128xf32>
    %30 = vector.shape_cast %29 : vector<128xf32> to vector<1x128xf32>
    %cst_22 = arith.constant dense<0.000000e+00> : vector<128xf32>
    %31 = vector.multi_reduction <add>, %24, %cst_22 [0] : vector<8x128xf32> to vector<128xf32>
    %32 = vector.shape_cast %31 : vector<128xf32> to vector<1x128xf32>
    %cst_23 = arith.constant 1.250000e-01 : f32
    %33 = vector.broadcast %cst_23 : f32 to vector<1x128xf32>
    %34 = arith.mulf %30, %33 : vector<1x128xf32>
    %cst_24 = arith.constant 1.250000e-01 : f32
    %35 = vector.broadcast %cst_24 : f32 to vector<1x128xf32>
    %36 = arith.mulf %32, %35 : vector<1x128xf32>
    %37 = vector.broadcast %34 : vector<1x128xf32> to vector<8x128xf32>
    %38 = arith.subf %21, %37 : vector<8x128xf32>
    %39 = vector.broadcast %36 : vector<1x128xf32> to vector<8x128xf32>
    %40 = arith.subf %24, %39 : vector<8x128xf32>
    %41 = arith.mulf %38, %38 : vector<8x128xf32>
    %42 = arith.mulf %40, %40 : vector<8x128xf32>
    %43 = arith.addf %41, %42 : vector<8x128xf32>
    %cst_25 = arith.constant dense<0.000000e+00> : vector<128xf32>
    %44 = vector.multi_reduction <add>, %43, %cst_25 [0] : vector<8x128xf32> to vector<128xf32>
    %45 = vector.shape_cast %44 : vector<128xf32> to vector<1x128xf32>
    %cst_26 = arith.constant 1.250000e-01 : f32
    %46 = vector.broadcast %cst_26 : f32 to vector<1x128xf32>
    %47 = arith.mulf %45, %46 : vector<1x128xf32>
    %cst_27 = arith.constant 9.99999974E-6 : f32
    %48 = vector.broadcast %cst_27 : f32 to vector<1x128xf32>
    %49 = arith.addf %47, %48 : vector<1x128xf32>
    %50 = math.rsqrt %49 : vector<1x128xf32>
    %51 = vector.broadcast %50 : vector<1x128xf32> to vector<8x128xf32>
    %52 = arith.mulf %38, %51 : vector<8x128xf32>
    %53 = vector.broadcast %50 : vector<1x128xf32> to vector<8x128xf32>
    %54 = arith.mulf %40, %53 : vector<8x128xf32>
    %55 = vector.broadcast %25 : vector<1x128xf32> to vector<8x128xf32>
    %56 = arith.mulf %55, %52 : vector<8x128xf32>
    %57 = vector.broadcast %26 : vector<1x128xf32> to vector<8x128xf32>
    %58 = arith.mulf %57, %54 : vector<8x128xf32>
    %59 = arith.subf %56, %58 : vector<8x128xf32>
    %60 = vector.broadcast %27 : vector<1x128xf32> to vector<8x128xf32>
    %61 = arith.addf %59, %60 : vector<8x128xf32>
    %62 = vector.broadcast %25 : vector<1x128xf32> to vector<8x128xf32>
    %63 = arith.mulf %62, %54 : vector<8x128xf32>
    %64 = vector.broadcast %26 : vector<1x128xf32> to vector<8x128xf32>
    %65 = arith.mulf %64, %52 : vector<8x128xf32>
    %66 = arith.addf %63, %65 : vector<8x128xf32>
    %67 = vector.broadcast %28 : vector<1x128xf32> to vector<8x128xf32>
    %68 = arith.addf %66, %67 : vector<8x128xf32>
    %cst_28 = arith.constant 2.000000e+00 : f32
    %69 = vector.broadcast %cst_28 : f32 to vector<8x128xf32>
    %70 = arith.mulf %69, %61 : vector<8x128xf32>
    %cst_29 = arith.constant 2.000000e+00 : f32
    %71 = vector.broadcast %cst_29 : f32 to vector<8x128xf32>
    %72 = arith.mulf %71, %68 : vector<8x128xf32>
    %cst_30 = arith.constant 0.000000e+00 : f32
    %73 = vector.broadcast %cst_30 : f32 to vector<8x128xf32>
    %74 = arith.cmpf oge, %70, %73 : vector<8x128xf32>
    %cst_31 = arith.constant 1.000000e+00 : f32
    %cst_32 = arith.constant -1.000000e+00 : f32
    %75 = vector.broadcast %cst_31 : f32 to vector<8x128xf32>
    %76 = vector.broadcast %cst_32 : f32 to vector<8x128xf32>
    %77 = arith.select %74, %75, %76 : vector<8x128xi1>, vector<8x128xf32>
    %78 = math.absf %70 : vector<8x128xf32>
    %cst_33 = arith.constant 0.000000e+00 : f32
    %79 = vector.broadcast %cst_33 : f32 to vector<8x128xf32>
    %80 = arith.subf %79, %78 : vector<8x128xf32>
    %81 = math.exp %80 : vector<8x128xf32>
    %82 = arith.mulf %81, %81 : vector<8x128xf32>
    %cst_34 = arith.constant 1.000000e+00 : f32
    %83 = vector.broadcast %cst_34 : f32 to vector<8x128xf32>
    %84 = arith.addf %83, %82 : vector<8x128xf32>
    %cst_35 = arith.constant 2.000000e+00 : f32
    %85 = vector.broadcast %cst_35 : f32 to vector<8x128xf32>
    %86 = arith.mulf %85, %81 : vector<8x128xf32>
    %87 = math.cos %72 : vector<8x128xf32>
    %88 = arith.mulf %86, %87 : vector<8x128xf32>
    %89 = arith.addf %84, %88 : vector<8x128xf32>
    %cst_36 = arith.constant 1.000000e+00 : f32
    %90 = vector.broadcast %cst_36 : f32 to vector<8x128xf32>
    %91 = arith.divf %90, %89 : vector<8x128xf32>
    %cst_37 = arith.constant 1.000000e+00 : f32
    %92 = vector.broadcast %cst_37 : f32 to vector<8x128xf32>
    %93 = arith.subf %92, %82 : vector<8x128xf32>
    %94 = arith.mulf %77, %93 : vector<8x128xf32>
    %95 = arith.mulf %94, %91 : vector<8x128xf32>
    %cst_38 = arith.constant 2.000000e+00 : f32
    %96 = vector.broadcast %cst_38 : f32 to vector<8x128xf32>
    %97 = arith.mulf %96, %81 : vector<8x128xf32>
    %98 = math.sin %72 : vector<8x128xf32>
    %99 = arith.mulf %97, %98 : vector<8x128xf32>
    %100 = arith.mulf %99, %91 : vector<8x128xf32>
    %101 = arith.addf %16, %95 : vector<8x128xf32>
    %102 = arith.addf %18, %100 : vector<8x128xf32>
    %103 = vector.extract_strided_slice %14 {offsets = [6, 0], sizes = [1, 128], strides = [1, 1]} : vector<16x128xf32> to vector<1x128xf32>
    %104 = vector.extract_strided_slice %14 {offsets = [7, 0], sizes = [1, 128], strides = [1, 1]} : vector<16x128xf32> to vector<1x128xf32>
    %105 = vector.extract_strided_slice %14 {offsets = [8, 0], sizes = [1, 128], strides = [1, 1]} : vector<16x128xf32> to vector<1x128xf32>
    %106 = vector.extract_strided_slice %14 {offsets = [9, 0], sizes = [1, 128], strides = [1, 1]} : vector<16x128xf32> to vector<1x128xf32>
    %cst_39 = arith.constant dense<0.000000e+00> : vector<128xf32>
    %107 = vector.multi_reduction <add>, %101, %cst_39 [0] : vector<8x128xf32> to vector<128xf32>
    %108 = vector.shape_cast %107 : vector<128xf32> to vector<1x128xf32>
    %cst_40 = arith.constant dense<0.000000e+00> : vector<128xf32>
    %109 = vector.multi_reduction <add>, %102, %cst_40 [0] : vector<8x128xf32> to vector<128xf32>
    %110 = vector.shape_cast %109 : vector<128xf32> to vector<1x128xf32>
    %cst_41 = arith.constant 1.250000e-01 : f32
    %111 = vector.broadcast %cst_41 : f32 to vector<1x128xf32>
    %112 = arith.mulf %108, %111 : vector<1x128xf32>
    %cst_42 = arith.constant 1.250000e-01 : f32
    %113 = vector.broadcast %cst_42 : f32 to vector<1x128xf32>
    %114 = arith.mulf %110, %113 : vector<1x128xf32>
    %115 = vector.broadcast %112 : vector<1x128xf32> to vector<8x128xf32>
    %116 = arith.subf %101, %115 : vector<8x128xf32>
    %117 = vector.broadcast %114 : vector<1x128xf32> to vector<8x128xf32>
    %118 = arith.subf %102, %117 : vector<8x128xf32>
    %119 = arith.mulf %116, %116 : vector<8x128xf32>
    %120 = arith.mulf %118, %118 : vector<8x128xf32>
    %121 = arith.addf %119, %120 : vector<8x128xf32>
    %cst_43 = arith.constant dense<0.000000e+00> : vector<128xf32>
    %122 = vector.multi_reduction <add>, %121, %cst_43 [0] : vector<8x128xf32> to vector<128xf32>
    %123 = vector.shape_cast %122 : vector<128xf32> to vector<1x128xf32>
    %cst_44 = arith.constant 1.250000e-01 : f32
    %124 = vector.broadcast %cst_44 : f32 to vector<1x128xf32>
    %125 = arith.mulf %123, %124 : vector<1x128xf32>
    %cst_45 = arith.constant 9.99999974E-6 : f32
    %126 = vector.broadcast %cst_45 : f32 to vector<1x128xf32>
    %127 = arith.addf %125, %126 : vector<1x128xf32>
    %128 = math.rsqrt %127 : vector<1x128xf32>
    %129 = vector.broadcast %128 : vector<1x128xf32> to vector<8x128xf32>
    %130 = arith.mulf %116, %129 : vector<8x128xf32>
    %131 = vector.broadcast %128 : vector<1x128xf32> to vector<8x128xf32>
    %132 = arith.mulf %118, %131 : vector<8x128xf32>
    %133 = vector.broadcast %103 : vector<1x128xf32> to vector<8x128xf32>
    %134 = arith.mulf %133, %130 : vector<8x128xf32>
    %135 = vector.broadcast %104 : vector<1x128xf32> to vector<8x128xf32>
    %136 = arith.mulf %135, %132 : vector<8x128xf32>
    %137 = arith.subf %134, %136 : vector<8x128xf32>
    %138 = vector.broadcast %105 : vector<1x128xf32> to vector<8x128xf32>
    %139 = arith.addf %137, %138 : vector<8x128xf32>
    %140 = vector.broadcast %103 : vector<1x128xf32> to vector<8x128xf32>
    %141 = arith.mulf %140, %132 : vector<8x128xf32>
    %142 = vector.broadcast %104 : vector<1x128xf32> to vector<8x128xf32>
    %143 = arith.mulf %142, %130 : vector<8x128xf32>
    %144 = arith.addf %141, %143 : vector<8x128xf32>
    %145 = vector.broadcast %106 : vector<1x128xf32> to vector<8x128xf32>
    %146 = arith.addf %144, %145 : vector<8x128xf32>
    %c0_46 = arith.constant 0 : index
    %c0_47 = arith.constant 0 : index
    %c0_48 = arith.constant 0 : index
    %147 = vector.load %arg5[%c0_46, %c0_47, %c0_48] : memref<2x8x128xf32, #tpu.memory_space<vmem>>, vector<1x8x128xf32>
    %148 = vector.shape_cast %147 : vector<1x8x128xf32> to vector<8x128xf32>
    %149 = vector.shape_cast %139 : vector<8x128xf32> to vector<1x8x128xf32>
    tpu.vector_store %arg5[%c0_46, %c0_47, %c0_48], %149 {strides = array<i32>} : memref<2x8x128xf32, #tpu.memory_space<vmem>>, vector<1x8x128xf32>,
    %c1_49 = arith.constant 1 : index
    %c0_50 = arith.constant 0 : index
    %c0_51 = arith.constant 0 : index
    %150 = vector.load %arg5[%c1_49, %c0_50, %c0_51] : memref<2x8x128xf32, #tpu.memory_space<vmem>>, vector<1x8x128xf32>
    %151 = vector.shape_cast %150 : vector<1x8x128xf32> to vector<8x128xf32>
    %152 = vector.shape_cast %146 : vector<8x128xf32> to vector<1x8x128xf32>
    tpu.vector_store %arg5[%c1_49, %c0_50, %c0_51], %152 {strides = array<i32>} : memref<2x8x128xf32, #tpu.memory_space<vmem>>, vector<1x8x128xf32>,
    return
  }
  func.func @transform_0(%arg0: i32) -> (i32, i32, i32) {
    %c0_i32 = arith.constant 0 : i32
    %c0_i32_0 = arith.constant 0 : i32
    %c0_i32_1 = arith.constant 0 : i32
    %c0_i32_2 = arith.constant 0 : i32
    return %c0_i32, %c0_i32_0, %c0_i32_1 : i32, i32, i32
  }
  func.func @transform_1(%arg0: i32) -> (i32, i32, i32) {
    %c0_i32 = arith.constant 0 : i32
    %c0_i32_0 = arith.constant 0 : i32
    %c0_i32_1 = arith.constant 0 : i32
    return %c0_i32, %c0_i32_0, %arg0 : i32, i32, i32
  }
  func.func @transform_2(%arg0: i32) -> (i32, i32) {
    %c0_i32 = arith.constant 0 : i32
    %c0_i32_0 = arith.constant 0 : i32
    return %c0_i32, %arg0 : i32, i32
  }
  func.func @transform_3(%arg0: i32) -> (i32, i32, i32) {
    %c0_i32 = arith.constant 0 : i32
    %c0_i32_0 = arith.constant 0 : i32
    %c0_i32_1 = arith.constant 0 : i32
    return %c0_i32, %c0_i32_0, %arg0 : i32, i32, i32
  }
  func.func @transform_4(%arg0: i32) -> (i32, i32, i32) {
    %c0_i32 = arith.constant 0 : i32
    %c0_i32_0 = arith.constant 0 : i32
    %c0_i32_1 = arith.constant 0 : i32
    return %c0_i32, %c0_i32_0, %arg0 : i32, i32, i32
  }
}

</mosaic_0001>

<llo_original>
// kernel: tpu_custom_call.1
$region0: #{tpu_custom_call.1}
  #allocation0 [shape = 'u32[]', space=smem, size = 0x4, offset = 0x4, fixed_abs, tag = 'smem constant byte address 0x4 - core index']
  #allocation1 [shape = 'u32[144,128]{1,0:T(1,128)}', space=vmem, size = 0x12000, scoped, tag = 'internal scratch']
  %s0 = inlined_call_operand.hbm [shape: bf16[2,8,128], index: 0, kind: input, shape index: {}]
  %s1 = inlined_call_operand.hbm [shape: bf16[2,128,128], index: 1, kind: input, shape index: {}]
  %s2 = inlined_call_operand.hbm [shape: f32[16,128], index: 2, kind: input, shape index: {}]
  %s3 = inlined_call_operand.hbm [shape: f32[2,8,128], index: 3, kind: input, shape index: {}]
  %s4 = inlined_call_operand.hbm [shape: f32[2,8,128], index: 4, kind: output, shape index: {}]
  %s5 = sld [smem:[#allocation0]]
  $region42: #{tpu_custom_call.1} parent=0
    _
  %s7 = ssub.s32 1, %s5
  %s8 = scalar_select 0, %s7, %s5
  $region1: #{tpu_custom_call.1} parent=0
    #allocation2 [shape = 'u8[4096]{0}', space=vmem, size = 0x1000, scoped, tag = 'input window, operand 0, single buffered']
    #allocation3 [shape = 's32[1]{0}', space=sflag, size = 0x4, scoped, tag = 'scoped memory for tpu_custom_call.1']
    #allocation4 [shape = 's32[1]{0}', space=sflag, size = 0x4, scoped, tag = 'scoped memory for tpu_custom_call.1']
    #allocation5 [shape = 'u8[65536]{0}', space=vmem, size = 0x10000, scoped, tag = 'input window, operand 1, single buffered']
    #allocation6 [shape = 's32[1]{0}', space=sflag, size = 0x4, scoped, tag = 'scoped memory for tpu_custom_call.1']
    #allocation7 [shape = 'u8[8192]{0}', space=vmem, size = 0x2000, scoped, tag = 'input window, operand 2, single buffered']
    #allocation8 [shape = 'u8[8192]{0}', space=vmem, size = 0x2000, scoped, tag = 'input window, operand 3, single buffered']
    #allocation9 [shape = 's32[1]{0}', space=sflag, size = 0x4, scoped, tag = 'scoped memory for tpu_custom_call.1']
    #allocation10 [shape = 'u8[8192]{0}', space=vmem, size = 0x2000, scoped, tag = 'output window, operand 0, single buffered']
    %9 = vsyncpa [#allocation3], 0
    %10 = vsyncpa [#allocation6], 0
    %11 = vsyncpa [#allocation9], 0
    %12 = vsyncpa [#allocation4], 0
    // Predicated region
    $region2: #{tpu_custom_call.1} parent=1 // pred_check
      _
    $region3: #{tpu_custom_call.1} parent=1 // pred_check_branch
      %14 = sbr.rel (0) target = $region5
    $region4: #{tpu_custom_call.1} parent=1 // pred_region
      %s16 = ssub.s32 128, 128
      %17 = vsyncadd [#allocation3], %s16
      %s18 = sshll.u32 [#allocation2], 4
      %s19 = int_to_ptr.vmem [resolvable:$true] %s18
      %24 = dma.hbm_to_vmem [thread:$0]  %s0, 128, %s19, [#allocation3], 64, 64, 4
    $region5: #{tpu_custom_call.1} parent=1 // pred_fallthru
      _
    // Predicated region
    $region6: #{tpu_custom_call.1} parent=1 // pred_check
      _
    $region7: #{tpu_custom_call.1} parent=1 // pred_check_branch
      %26 = sbr.rel (0) target = $region9
    $region8: #{tpu_custom_call.1} parent=1 // pred_region
      %s28 = ssub.s32 2048, 2048
      %29 = vsyncadd [#allocation6], %s28
      %s30 = sshll.u32 [#allocation5], 4
      %s31 = int_to_ptr.vmem [resolvable:$true] %s30
      %36 = dma.hbm_to_vmem [thread:$0]  %s1, 2048, %s31, [#allocation6], 64, 64, 4
    $region9: #{tpu_custom_call.1} parent=1 // pred_fallthru
      _
    // Predicated region
    $region10: #{tpu_custom_call.1} parent=1 // pred_check
      _
    $region11: #{tpu_custom_call.1} parent=1 // pred_check_branch
      %38 = sbr.rel (0) target = $region13
    $region12: #{tpu_custom_call.1} parent=1 // pred_region
      %s40 = ssub.s32 256, 256
      %41 = vsyncadd [#allocation6], %s40
      %s42 = sshll.u32 [#allocation7], 4
      %s43 = int_to_ptr.vmem [resolvable:$true] %s42
      %48 = dma.hbm_to_vmem [thread:$0]  %s2, 256, %s43, [#allocation6], 128, 128, 8
    $region13: #{tpu_custom_call.1} parent=1 // pred_fallthru
      _
    // Predicated region
    $region14: #{tpu_custom_call.1} parent=1 // pred_check
      _
    $region15: #{tpu_custom_call.1} parent=1 // pred_check_branch
      %50 = sbr.rel (0) target = $region17
    $region16: #{tpu_custom_call.1} parent=1 // pred_region
      %s52 = ssub.s32 256, 256
      %53 = vsyncadd [#allocation9], %s52
      %s54 = sshll.u32 [#allocation8], 4
      %s55 = int_to_ptr.vmem [resolvable:$true] %s54
      %60 = dma.hbm_to_vmem [thread:$0]  %s3, 256, %s55, [#allocation9], 128, 128, 8
    $region17: #{tpu_custom_call.1} parent=1 // pred_fallthru
      _
    // Predicated region
    $region18: #{tpu_custom_call.1} parent=1 // pred_check
      _
    $region19: #{tpu_custom_call.1} parent=1 // pred_check_branch
      %62 = sbr.rel (0) target = $region21
    $region20: #{tpu_custom_call.1} parent=1 // pred_region
      %63 = dma.done [#allocation3], 128
    $region21: #{tpu_custom_call.1} parent=1 // pred_fallthru
      _
    // Predicated region
    $region22: #{tpu_custom_call.1} parent=1 // pred_check
      _
    $region23: #{tpu_custom_call.1} parent=1 // pred_check_branch
      %65 = sbr.rel (0) target = $region25
    $region24: #{tpu_custom_call.1} parent=1 // pred_region
      %66 = dma.done [#allocation6], 2048
    $region25: #{tpu_custom_call.1} parent=1 // pred_fallthru
      _
    // Predicated region
    $region26: #{tpu_custom_call.1} parent=1 // pred_check
      _
    $region27: #{tpu_custom_call.1} parent=1 // pred_check_branch
      %68 = sbr.rel (0) target = $region29
    $region28: #{tpu_custom_call.1} parent=1 // pred_region
      %69 = dma.done [#allocation6], 256
    $region29: #{tpu_custom_call.1} parent=1 // pred_fallthru
      _
    // Predicated region
    $region30: #{tpu_custom_call.1} parent=1 // pred_check
      _
    $region31: #{tpu_custom_call.1} parent=1 // pred_check_branch
      %71 = sbr.rel (0) target = $region33
    $region32: #{tpu_custom_call.1} parent=1 // pred_region
      %72 = dma.done [#allocation9], 256
    $region33: #{tpu_custom_call.1} parent=1 // pred_fallthru
      _
    %v74 = vld [vmem:[#allocation2] sm:$0xf]
    %s75 = scalar_lea.vmem [#allocation2], 4
    %v76 = vld [vmem:[%s75] sm:$0xf]
    %v77 = vld [vmem:[#allocation5] sm:$0xf]
    %v78 = vld [vmem:[#allocation5 + $0x4] sm:$0xf]
    %v79 = vld [vmem:[#allocation5 + $0x8] sm:$0xf]
    %v80 = vld [vmem:[#allocation5 + $0xc] sm:$0xf]
    %v81 = vld [vmem:[#allocation5 + $0x10] sm:$0xf]
    %v82 = vld [vmem:[#allocation5 + $0x14] sm:$0xf]
    %v83 = vld [vmem:[#allocation5 + $0x18] sm:$0xf]
    %v84 = vld [vmem:[#allocation5 + $0x1c] sm:$0xf]
    %v85 = vld [vmem:[#allocation5 + $0x20] sm:$0xf]
    %v86 = vld [vmem:[#allocation5 + $0x24] sm:$0xf]
    %v87 = vld [vmem:[#allocation5 + $0x28] sm:$0xf]
    %v88 = vld [vmem:[#allocation5 + $0x2c] sm:$0xf]
    %v89 = vld [vmem:[#allocation5 + $0x30] sm:$0xf]
    %v90 = vld [vmem:[#allocation5 + $0x34] sm:$0xf]
    %v91 = vld [vmem:[#allocation5 + $0x38] sm:$0xf]
    %v92 = vld [vmem:[#allocation5 + $0x3c] sm:$0xf]
    %s93 = scalar_lea.vmem [#allocation5], 64
    %v94 = vld [vmem:[%s93] sm:$0xf]
    %v95 = vld [vmem:[%s93 + $0x4] sm:$0xf]
    %v96 = vld [vmem:[%s93 + $0x8] sm:$0xf]
    %v97 = vld [vmem:[%s93 + $0xc] sm:$0xf]
    %v98 = vld [vmem:[%s93 + $0x10] sm:$0xf]
    %v99 = vld [vmem:[%s93 + $0x14] sm:$0xf]
    %v100 = vld [vmem:[%s93 + $0x18] sm:$0xf]
    %v101 = vld [vmem:[%s93 + $0x1c] sm:$0xf]
    %v102 = vld [vmem:[%s93 + $0x20] sm:$0xf]
    %v103 = vld [vmem:[%s93 + $0x24] sm:$0xf]
    %v104 = vld [vmem:[%s93 + $0x28] sm:$0xf]
    %v105 = vld [vmem:[%s93 + $0x2c] sm:$0xf]
    %v106 = vld [vmem:[%s93 + $0x30] sm:$0xf]
    %v107 = vld [vmem:[%s93 + $0x34] sm:$0xf]
    %v108 = vld [vmem:[%s93 + $0x38] sm:$0xf]
    %v109 = vld [vmem:[%s93 + $0x3c] sm:$0xf]
    %v126 = vunpack.c.l.b16 %v77
    %v127 = vunpack.c.l.b16 %v78
    %v128 = vunpack.c.l.b16 %v79
    %v129 = vunpack.c.l.b16 %v80
    %v130 = vunpack.c.l.b16 %v81
    %v131 = vunpack.c.l.b16 %v82
    %v132 = vunpack.c.l.b16 %v83
    %v133 = vunpack.c.l.b16 %v84
    %v134 = vunpack.c.l.b16 %v85
    %v135 = vunpack.c.l.b16 %v86
    %v136 = vunpack.c.l.b16 %v87
    %v137 = vunpack.c.l.b16 %v88
    %v138 = vunpack.c.l.b16 %v89
    %v139 = vunpack.c.l.b16 %v90
    %v140 = vunpack.c.l.b16 %v91
    %v141 = vunpack.c.l.b16 %v92
    %v142 = vpack.c.b16 %v127, %v126
    %v143 = vpack.c.b16 %v129, %v128
    %v144 = vpack.c.b16 %v131, %v130
    %v145 = vpack.c.b16 %v133, %v132
    %v146 = vpack.c.b16 %v135, %v134
    %v147 = vpack.c.b16 %v137, %v136
    %v148 = vpack.c.b16 %v139, %v138
    %v149 = vpack.c.b16 %v141, %v140
    %158 = vmatprep.subr.bf16.mxu0 0
    %159 = vmatpush1.bf16.msra.mxu0 %v142
    %160 = vmatprep.subr.bf16.mxu0 0
    %161 = vmatpush1.bf16.msra.mxu0 %v143
    %162 = vmatprep.subr.bf16.mxu0 0
    %163 = vmatpush1.bf16.msra.mxu0 %v144
    %164 = vmatprep.subr.bf16.mxu0 0
    %165 = vmatpush1.bf16.msra.mxu0 %v145
    %166 = vmatprep.subr.bf16.mxu0 0
    %167 = vmatpush1.bf16.msra.mxu0 %v146
    %168 = vmatprep.subr.bf16.mxu0 0
    %169 = vmatpush1.bf16.msra.mxu0 %v147
    %170 = vmatprep.subr.bf16.mxu0 0
    %171 = vmatpush1.bf16.msra.mxu0 %v148
    %172 = vmatprep.subr.bf16.mxu0 0
    %173 = vmatpush1.bf16.msra.mxu0 %v149
    %174 = vmatprep.subr.bf16.mxu0 0
    %175 = vmatpush1.bf16.msra.mxu0 0
    %176 = vmatprep.subr.bf16.mxu0 0
    %177 = vmatpush1.bf16.msra.mxu0 0
    %178 = vmatprep.subr.bf16.mxu0 0
    %179 = vmatpush1.bf16.msra.mxu0 0
    %180 = vmatprep.subr.bf16.mxu0 0
    %181 = vmatpush1.bf16.msra.mxu0 0
    %182 = vmatprep.subr.bf16.mxu0 0
    %183 = vmatpush1.bf16.msra.mxu0 0
    %184 = vmatprep.subr.bf16.mxu0 0
    %185 = vmatpush1.bf16.msra.mxu0 0
    %186 = vmatprep.subr.bf16.mxu0 0
    %187 = vmatpush1.bf16.msra.mxu0 0
    %188 = vmatprep.subr.bf16.mxu0 0
    %189 = vmatpush1.bf16.msra.mxu0 0
    %190 = vmatprep.mubr.bf16.mxu0 0
    %191 = vmatmul.mubr.bf16.gmra.mrb[0].mxu0 %v74
    %v192 = vpop.f32.mrb[0].mxu0
    %v193 = vadd.f32 0.0, %v192
    %v194 = vpop.f32.mrb[0].mxu0
    %v195 = vpop.f32.mrb[0].mxu0
    %v196 = vpop.f32.mrb[0].mxu0
    %197 = vdwg.mxu0
    %v214 = vunpack.c.l.b16 %v94
    %v215 = vunpack.c.l.b16 %v95
    %v216 = vunpack.c.l.b16 %v96
    %v217 = vunpack.c.l.b16 %v97
    %v218 = vunpack.c.l.b16 %v98
    %v219 = vunpack.c.l.b16 %v99
    %v220 = vunpack.c.l.b16 %v100
    %v221 = vunpack.c.l.b16 %v101
    %v222 = vunpack.c.l.b16 %v102
    %v223 = vunpack.c.l.b16 %v103
    %v224 = vunpack.c.l.b16 %v104
    %v225 = vunpack.c.l.b16 %v105
    %v226 = vunpack.c.l.b16 %v106
    %v227 = vunpack.c.l.b16 %v107
    %v228 = vunpack.c.l.b16 %v108
    %v229 = vunpack.c.l.b16 %v109
    %v230 = vpack.c.b16 %v215, %v214
    %v231 = vpack.c.b16 %v217, %v216
    %v232 = vpack.c.b16 %v219, %v218
    %v233 = vpack.c.b16 %v221, %v220
    %v234 = vpack.c.b16 %v223, %v222
    %v235 = vpack.c.b16 %v225, %v224
    %v236 = vpack.c.b16 %v227, %v226
    %v237 = vpack.c.b16 %v229, %v228
    %246 = vmatprep.subr.bf16.mxu0 0
    %247 = vmatpush1.bf16.msra.mxu0 %v230
    %248 = vmatprep.subr.bf16.mxu0 0
    %249 = vmatpush1.bf16.msra.mxu0 %v231
    %250 = vmatprep.subr.bf16.mxu0 0
    %251 = vmatpush1.bf16.msra.mxu0 %v232
    %252 = vmatprep.subr.bf16.mxu0 0
    %253 = vmatpush1.bf16.msra.mxu0 %v233
    %254 = vmatprep.subr.bf16.mxu0 0
    %255 = vmatpush1.bf16.msra.mxu0 %v234
    %256 = vmatprep.subr.bf16.mxu0 0
    %257 = vmatpush1.bf16.msra.mxu0 %v235
    %258 = vmatprep.subr.bf16.mxu0 0
    %259 = vmatpush1.bf16.msra.mxu0 %v236
    %260 = vmatprep.subr.bf16.mxu0 0
    %261 = vmatpush1.bf16.msra.mxu0 %v237
    %262 = vmatprep.subr.bf16.mxu0 0
    %263 = vmatpush1.bf16.msra.mxu0 0
    %264 = vmatprep.subr.bf16.mxu0 0
    %265 = vmatpush1.bf16.msra.mxu0 0
    %266 = vmatprep.subr.bf16.mxu0 0
    %267 = vmatpush1.bf16.msra.mxu0 0
    %268 = vmatprep.subr.bf16.mxu0 0
    %269 = vmatpush1.bf16.msra.mxu0 0
    %270 = vmatprep.subr.bf16.mxu0 0
    %271 = vmatpush1.bf16.msra.mxu0 0
    %272 = vmatprep.subr.bf16.mxu0 0
    %273 = vmatpush1.bf16.msra.mxu0 0
    %274 = vmatprep.subr.bf16.mxu0 0
    %275 = vmatpush1.bf16.msra.mxu0 0
    %276 = vmatprep.subr.bf16.mxu0 0
    %277 = vmatpush1.bf16.msra.mxu0 0
    %278 = vmatprep.mubr.bf16.mxu0 0
    %279 = vmatmul.mubr.bf16.gmra.mrb[0].mxu0 %v76
    %v280 = vpop.f32.mrb[0].mxu0
    %v281 = vadd.f32 0.0, %v280
    %v282 = vpop.f32.mrb[0].mxu0
    %v283 = vpop.f32.mrb[0].mxu0
    %v284 = vpop.f32.mrb[0].mxu0
    %285 = vdwg.mxu0
    %v286 = vsub.f32 %v193, %v281
    %287 = vmatprep.subr.bf16.mxu0 0
    %288 = vmatpush1.bf16.msra.mxu0 %v142
    %289 = vmatprep.subr.bf16.mxu0 0
    %290 = vmatpush1.bf16.msra.mxu0 %v143
    %291 = vmatprep.subr.bf16.mxu0 0
    %292 = vmatpush1.bf16.msra.mxu0 %v144
    %293 = vmatprep.subr.bf16.mxu0 0
    %294 = vmatpush1.bf16.msra.mxu0 %v145
    %295 = vmatprep.subr.bf16.mxu0 0
    %296 = vmatpush1.bf16.msra.mxu0 %v146
    %297 = vmatprep.subr.bf16.mxu0 0
    %298 = vmatpush1.bf16.msra.mxu0 %v147
    %299 = vmatprep.subr.bf16.mxu0 0
    %300 = vmatpush1.bf16.msra.mxu0 %v148
    %301 = vmatprep.subr.bf16.mxu0 0
    %302 = vmatpush1.bf16.msra.mxu0 %v149
    %303 = vmatprep.subr.bf16.mxu0 0
    %304 = vmatpush1.bf16.msra.mxu0 0
    %305 = vmatprep.subr.bf16.mxu0 0
    %306 = vmatpush1.bf16.msra.mxu0 0
    %307 = vmatprep.subr.bf16.mxu0 0
    %308 = vmatpush1.bf16.msra.mxu0 0
    %309 = vmatprep.subr.bf16.mxu0 0
    %310 = vmatpush1.bf16.msra.mxu0 0
    %311 = vmatprep.subr.bf16.mxu0 0
    %312 = vmatpush1.bf16.msra.mxu0 0
    %313 = vmatprep.subr.bf16.mxu0 0
    %314 = vmatpush1.bf16.msra.mxu0 0
    %315 = vmatprep.subr.bf16.mxu0 0
    %316 = vmatpush1.bf16.msra.mxu0 0
    %317 = vmatprep.subr.bf16.mxu0 0
    %318 = vmatpush1.bf16.msra.mxu0 0
    %319 = vmatprep.mubr.bf16.mxu0 0
    %320 = vmatmul.mubr.bf16.gmra.mrb[0].mxu0 %v76
    %v321 = vpop.f32.mrb[0].mxu0
    %v322 = vadd.f32 0.0, %v321
    %v323 = vpop.f32.mrb[0].mxu0
    %v324 = vpop.f32.mrb[0].mxu0
    %v325 = vpop.f32.mrb[0].mxu0
    %326 = vdwg.mxu0
    %327 = vmatprep.subr.bf16.mxu0 0
    %328 = vmatpush1.bf16.msra.mxu0 %v230
    %329 = vmatprep.subr.bf16.mxu0 0
    %330 = vmatpush1.bf16.msra.mxu0 %v231
    %331 = vmatprep.subr.bf16.mxu0 0
    %332 = vmatpush1.bf16.msra.mxu0 %v232
    %333 = vmatprep.subr.bf16.mxu0 0
    %334 = vmatpush1.bf16.msra.mxu0 %v233
    %335 = vmatprep.subr.bf16.mxu0 0
    %336 = vmatpush1.bf16.msra.mxu0 %v234
    %337 = vmatprep.subr.bf16.mxu0 0
    %338 = vmatpush1.bf16.msra.mxu0 %v235
    %339 = vmatprep.subr.bf16.mxu0 0
    %340 = vmatpush1.bf16.msra.mxu0 %v236
    %341 = vmatprep.subr.bf16.mxu0 0
    %342 = vmatpush1.bf16.msra.mxu0 %v237
    %343 = vmatprep.subr.bf16.mxu0 0
    %344 = vmatpush1.bf16.msra.mxu0 0
    %345 = vmatprep.subr.bf16.mxu0 0
    %346 = vmatpush1.bf16.msra.mxu0 0
    %347 = vmatprep.subr.bf16.mxu0 0
    %348 = vmatpush1.bf16.msra.mxu0 0
    %349 = vmatprep.subr.bf16.mxu0 0
    %350 = vmatpush1.bf16.msra.mxu0 0
    %351 = vmatprep.subr.bf16.mxu0 0
    %352 = vmatpush1.bf16.msra.mxu0 0
    %353 = vmatprep.subr.bf16.mxu0 0
    %354 = vmatpush1.bf16.msra.mxu0 0
    %355 = vmatprep.subr.bf16.mxu0 0
    %356 = vmatpush1.bf16.msra.mxu0 0
    %357 = vmatprep.subr.bf16.mxu0 0
    %358 = vmatpush1.bf16.msra.mxu0 0
    %359 = vmatprep.mubr.bf16.mxu0 0
    %360 = vmatmul.mubr.bf16.gmra.mrb[0].mxu0 %v74
    %v361 = vpop.f32.mrb[0].mxu0
    %v362 = vadd.f32 %v322, %v361
    %v363 = vpop.f32.mrb[0].mxu0
    %v364 = vpop.f32.mrb[0].mxu0
    %v365 = vpop.f32.mrb[0].mxu0
    %366 = vdwg.mxu0
    %v367 = vld [vmem:[#allocation7] sm:$0xff]
    %v368 = vld [vmem:[#allocation7 + $0x8] sm:$0xff]
    %v369 = vld [vmem:[#allocation8] sm:$0xff]
    %s370 = scalar_lea.vmem [#allocation8], 8
    %v371 = vld [vmem:[%s370] sm:$0xff]
    %v372 = vlaneseq
    %v373 = vshrl.u32 %v372, 7
    %v374 = vsub.s32 0, %v373
    %v375 = vrot.slane %v367, %v374
    %v376 = vadd.f32 %v286, %v375
    %v377 = vlaneseq
    %v378 = vshrl.u32 %v377, 7
    %v379 = vsub.s32 1, %v378
    %v380 = vrot.slane %v367, %v379
    %v381 = vadd.f32 %v362, %v380
    %v382 = vrot.slane %v376, 4
    %v383 = vadd.f32 %v376, %v382
    %v384 = vrot.slane %v383, 2
    %v385 = vadd.f32 %v383, %v384
    %v386 = vrot.slane %v385, 1
    %v387 = vadd.f32 %v385, %v386
    %v388 = vrot.slane %v381, 4
    %v389 = vadd.f32 %v381, %v388
    %v390 = vrot.slane %v389, 2
    %v391 = vadd.f32 %v389, %v390
    %v392 = vrot.slane %v391, 1
    %v393 = vadd.f32 %v391, %v392
    %v394 = vmul.f32 %v387, 0.125
    %v395 = vmul.f32 %v393, 0.125
    %v396 = vsub.f32 %v376, %v394
    %v397 = vsub.f32 %v381, %v395
    %v398 = vmul.f32 %v396, %v396
    %v399 = vmul.f32 %v397, %v397
    %v400 = vadd.f32 %v398, %v399
    %v401 = vrot.slane %v400, 4
    %v402 = vadd.f32 %v400, %v401
    %v403 = vrot.slane %v402, 2
    %v404 = vadd.f32 %v402, %v403
    %v405 = vrot.slane %v404, 1
    %v406 = vadd.f32 %v404, %v405
    %v407 = vmul.f32 %v406, 0.125
    %v408 = vadd.f32 %v407, 1e-05
    %v409 = vrsqrt.pop %v408
    %v410 = vmul.f32 %v396, %v409
    %v411 = vmul.f32 %v397, %v409
    %v412 = vlaneseq
    %v413 = vshrl.u32 %v412, 7
    %v414 = vsub.s32 2, %v413
    %v415 = vrot.slane %v367, %v414
    %v416 = vmul.f32 %v415, %v410
    %v417 = vlaneseq
    %v418 = vshrl.u32 %v417, 7
    %v419 = vsub.s32 3, %v418
    %v420 = vrot.slane %v367, %v419
    %v421 = vmul.f32 %v420, %v411
    %v422 = vsub.f32 %v416, %v421
    %v423 = vlaneseq
    %v424 = vshrl.u32 %v423, 7
    %v425 = vsub.s32 4, %v424
    %v426 = vrot.slane %v367, %v425
    %v427 = vadd.f32 %v422, %v426
    %v428 = vmul.f32 %v415, %v411
    %v429 = vmul.f32 %v420, %v410
    %v430 = vadd.f32 %v428, %v429
    %v431 = vlaneseq
    %v432 = vshrl.u32 %v431, 7
    %v433 = vsub.s32 5, %v432
    %v434 = vrot.slane %v367, %v433
    %v435 = vadd.f32 %v430, %v434
    %v436 = vmul.f32 %v427, 2.0
    %v437 = vmul.f32 %v435, 2.0
    %vm438 = vcmp.ge.f32.partialorder %v436, 0.0
    %v439 = vsel %vm438, 1.0, -1.0
    %v440 = vand.u32 2147483647, %v436
    %v441 = vsub.f32 0.0, %v440
    %v442 = vmul.f32 %v441, 1.442695
    %v443 = vpow.pop %v442
    %v444 = vmul.f32 %v443, %v443
    %v445 = vadd.f32 %v444, 1.0
    %v446 = vmul.f32 %v443, 2.0
    %v447 = vand.u32 2147483647, %v437
    %vm448 = vcmp.le.f32.partialorder %v447, 0.7853982
    %vm449 = vcmp.lt.s32.totalorder %v437, 0
    %v450 = vand.u32 %v437, 2139095040
    %v451 = vshrl.u32 %v450, 23
    %v452 = vsub.s32 %v451, 127
    %v453 = vand.u32 2147483647, %v437
    %v454 = vand.u32 %v453, 8388607
    %v455 = vor.u32 %v454, 8388608
    %v456 = vsub.s32 0, %v455
    %v457 = vadd.s32 %v452, 1
    %vm458 = vcmp.gt.s32.totalorder %v457, 0
    %v459 = vsel %vm458, %v457, 0
    %v460 = vshrl.u32 %v459, 5
    %v461 = vand.u32 %v459, 31
    %v462 = vsub.s32 32, %v461
    %v463 = vshrl.u32 683565275, %v462
    %v464 = vshll.u32 683565275, %v461
    %v465 = vshrl.u32 2475754826, %v462
    %v466 = vor.u32 %v464, %v465
    %v467 = vshll.u32 2475754826, %v461
    %v468 = vshrl.u32 2131351028, %v462
    %v469 = vor.u32 %v467, %v468
    %v470 = vshll.u32 2131351028, %v461
    %v471 = vshrl.u32 2102212464, %v462
    %v472 = vor.u32 %v470, %v471
    %v473 = vshll.u32 2102212464, %v461
    %v474 = vshrl.u32 920167782, %v462
    %v475 = vor.u32 %v473, %v474
    %v476 = vshll.u32 920167782, %v461
    %v477 = vshrl.u32 1326507024, %v462
    %v478 = vor.u32 %v476, %v477
    %vm479 = vcmp.lt.s32.totalorder %v460, 1
    %vm480 = vcmp.lt.s32.totalorder %v460, 2
    %vm481 = vcmp.lt.s32.totalorder %v460, 3
    %vm482 = vcmp.lt.s32.totalorder %v460, 4
    %v483 = vsel %vm479, %v463, %v466
    %v484 = vsel %vm482, %v472, 2102212464
    %v485 = vsel %vm481, %v469, %v484
    %v486 = vsel %vm480, %v483, %v485
    %v487 = vsel %vm479, %v466, %v469
    %v488 = vsel %vm482, %v475, 920167782
    %v489 = vsel %vm481, %v472, %v488
    %v490 = vsel %vm480, %v487, %v489
    %v491 = vsel %vm479, %v469, %v472
    %v492 = vsel %vm482, %v478, 1326507024
    %v493 = vsel %vm481, %v475, %v492
    %v494 = vsel %vm480, %v491, %v493
    %v495 = vshll.u32 %v455, 8
    %v496 = vmul.u32.u64.compose %v495, %v494
    %v497 = vextract.low.u32 %v496
    %v498 = vextract.high.u32 %v496
    %v499 = vmul.u32.u64.compose %v495, %v490
    %v500 = vextract.low.u32 %v499
    %v501 = vextract.high.u32 %v499
    %v502 = vmul.u32 %v495, %v486
    %v503 = vadd.s32 %v498, %v500
    %vm504 = vc.u32 %v498, %v500
    %v505 = vadd.s32 %v501, 1
    %v506 = vsel %vm504, %v505, %v501
    %v507 = vadd.s32 %v502, %v506
    %v508 = vadd.s32 %v507, 536870912
    %v509 = vshrl.u32 %v508, 30
    %v510 = vshll.u32 %v509, 30
    %v511 = vsub.s32 %v507, %v510
    %vm512 = vcmp.lt.s32.totalorder %v511, 0
    %v513 = vsub.s32 0, %v511
    %v514 = vsel %vm512, %v513, %v511
    %v515 = vclz %v514
    %v516 = vsub.s32 %v515, 2
    %vm517 = vcmp.gt.s32.totalorder 0, %v516
    %v518 = vsel %vm517, 0, %v516
    %v519 = vsub.s32 32, %v518
    %v520 = vshll.u32 %v511, %v518
    %v521 = vshrl.u32 %v503, %v519
    %v522 = vor.u32 %v520, %v521
    %v523 = vsub.s32 4294967266, %v518
    %v524 = vadd.s32 %v523, 127
    %v525 = vshll.u32 %v524, 23
    %v526 = vor.u32 4788187, %v525
    %v527 = vand.u32 2147483647, %v526
    %v529 = vcvt.s32.f32 %v522
    %v530 = vmul.f32 %v529, %v527
    %v531 = vxor.u32 %v530, 2147483648
    %v532 = vsel %vm449, %v531, %v530
    %v533 = vsub.s32 4, %v509
    %v534 = vsel %vm449, %v533, %v509
    %v535 = vsel %vm448, %v437, %v532
    %v536 = vsel %vm448, 0, %v534
    %v537 = vcosq.f32.pop %v535
    %v538 = vsinq.f32.pop %v535
    %vm539 = vweird.f32 %v437
    %v540 = vand.u32 %v536, 3
    %vm541 = vcmp.lt.s32.totalorder %v540, 2
    %vm542 = vcmp.eq.s32.totalorder %v540, 0
    %v543 = vxor.u32 %v538, 2147483648
    %v544 = vsel %vm542, %v537, %v543
    %vm545 = vcmp.eq.s32.totalorder %v540, 2
    %v546 = vxor.u32 %v537, 2147483648
    %v547 = vsel %vm545, %v546, %v538
    %v548 = vsel %vm541, %v544, %v547
    %v549 = vsel %vm539, nan, %v548
    %v550 = vmul.f32 %v446, %v549
    %v551 = vadd.f32 %v445, %v550
    %v552 = vrcp.pop %v551
    %v553 = vmul.f32 1.0, %v552
    %v554 = vsub.f32 1.0, %v444
    %v555 = vmul.f32 %v439, %v554
    %v556 = vmul.f32 %v555, %v553
    %v557 = vand.u32 2147483647, %v437
    %vm558 = vcmp.le.f32.partialorder %v557, 0.7853982
    %vm559 = vcmp.lt.s32.totalorder %v437, 0
    %v560 = vand.u32 %v437, 2139095040
    %v561 = vshrl.u32 %v560, 23
    %v562 = vsub.s32 %v561, 127
    %v563 = vand.u32 2147483647, %v437
    %v564 = vand.u32 %v563, 8388607
    %v565 = vor.u32 %v564, 8388608
    %v566 = vsub.s32 0, %v565
    %v567 = vadd.s32 %v562, 1
    %vm568 = vcmp.gt.s32.totalorder %v567, 0
    %v569 = vsel %vm568, %v567, 0
    %v570 = vshrl.u32 %v569, 5
    %v571 = vand.u32 %v569, 31
    %v572 = vsub.s32 32, %v571
    %v573 = vshrl.u32 683565275, %v572
    %v574 = vshll.u32 683565275, %v571
    %v575 = vshrl.u32 2475754826, %v572
    %v576 = vor.u32 %v574, %v575
    %v577 = vshll.u32 2475754826, %v571
    %v578 = vshrl.u32 2131351028, %v572
    %v579 = vor.u32 %v577, %v578
    %v580 = vshll.u32 2131351028, %v571
    %v581 = vshrl.u32 2102212464, %v572
    %v582 = vor.u32 %v580, %v581
    %v583 = vshll.u32 2102212464, %v571
    %v584 = vshrl.u32 920167782, %v572
    %v585 = vor.u32 %v583, %v584
    %v586 = vshll.u32 920167782, %v571
    %v587 = vshrl.u32 1326507024, %v572
    %v588 = vor.u32 %v586, %v587
    %vm589 = vcmp.lt.s32.totalorder %v570, 1
    %vm590 = vcmp.lt.s32.totalorder %v570, 2
    %vm591 = vcmp.lt.s32.totalorder %v570, 3
    %vm592 = vcmp.lt.s32.totalorder %v570, 4
    %v593 = vsel %vm589, %v573, %v576
    %v594 = vsel %vm592, %v582, 2102212464
    %v595 = vsel %vm591, %v579, %v594
    %v596 = vsel %vm590, %v593, %v595
    %v597 = vsel %vm589, %v576, %v579
    %v598 = vsel %vm592, %v585, 920167782
    %v599 = vsel %vm591, %v582, %v598
    %v600 = vsel %vm590, %v597, %v599
    %v601 = vsel %vm589, %v579, %v582
    %v602 = vsel %vm592, %v588, 1326507024
    %v603 = vsel %vm591, %v585, %v602
    %v604 = vsel %vm590, %v601, %v603
    %v605 = vshll.u32 %v565, 8
    %v606 = vmul.u32.u64.compose %v605, %v604
    %v607 = vextract.low.u32 %v606
    %v608 = vextract.high.u32 %v606
    %v609 = vmul.u32.u64.compose %v605, %v600
    %v610 = vextract.low.u32 %v609
    %v611 = vextract.high.u32 %v609
    %v612 = vmul.u32 %v605, %v596
    %v613 = vadd.s32 %v608, %v610
    %vm614 = vc.u32 %v608, %v610
    %v615 = vadd.s32 %v611, 1
    %v616 = vsel %vm614, %v615, %v611
    %v617 = vadd.s32 %v612, %v616
    %v618 = vadd.s32 %v617, 536870912
    %v619 = vshrl.u32 %v618, 30
    %v620 = vshll.u32 %v619, 30
    %v621 = vsub.s32 %v617, %v620
    %vm622 = vcmp.lt.s32.totalorder %v621, 0
    %v623 = vsub.s32 0, %v621
    %v624 = vsel %vm622, %v623, %v621
    %v625 = vclz %v624
    %v626 = vsub.s32 %v625, 2
    %vm627 = vcmp.gt.s32.totalorder 0, %v626
    %v628 = vsel %vm627, 0, %v626
    %v629 = vsub.s32 32, %v628
    %v630 = vshll.u32 %v621, %v628
    %v631 = vshrl.u32 %v613, %v629
    %v632 = vor.u32 %v630, %v631
    %v633 = vsub.s32 4294967266, %v628
    %v634 = vadd.s32 %v633, 127
    %v635 = vshll.u32 %v634, 23
    %v636 = vor.u32 4788187, %v635
    %v637 = vand.u32 2147483647, %v636
    %v639 = vcvt.s32.f32 %v632
    %v640 = vmul.f32 %v639, %v637
    %v641 = vxor.u32 %v640, 2147483648
    %v642 = vsel %vm559, %v641, %v640
    %v643 = vsub.s32 4, %v619
    %v644 = vsel %vm559, %v643, %v619
    %v645 = vsel %vm558, %v437, %v642
    %v646 = vsel %vm558, 0, %v644
    %v647 = vcosq.f32.pop %v645
    %v648 = vsinq.f32.pop %v645
    %vm649 = vweird.f32 %v437
    %v650 = vadd.s32 %v646, 3
    %v651 = vand.u32 %v650, 3
    %vm652 = vcmp.lt.s32.totalorder %v651, 2
    %vm653 = vcmp.eq.s32.totalorder %v651, 0
    %v654 = vxor.u32 %v648, 2147483648
    %v655 = vsel %vm653, %v647, %v654
    %vm656 = vcmp.eq.s32.totalorder %v651, 2
    %v657 = vxor.u32 %v647, 2147483648
    %v658 = vsel %vm656, %v657, %v648
    %v659 = vsel %vm652, %v655, %v658
    %v660 = vsel %vm649, nan, %v659
    %v661 = vmul.f32 %v446, %v660
    %v662 = vmul.f32 %v661, %v553
    %v663 = vadd.f32 %v369, %v556
    %v664 = vadd.f32 %v371, %v662
    %v665 = vrot.slane %v663, 4
    %v666 = vadd.f32 %v663, %v665
    %v667 = vrot.slane %v666, 2
    %v668 = vadd.f32 %v666, %v667
    %v669 = vrot.slane %v668, 1
    %v670 = vadd.f32 %v668, %v669
    %v671 = vrot.slane %v664, 4
    %v672 = vadd.f32 %v664, %v671
    %v673 = vrot.slane %v672, 2
    %v674 = vadd.f32 %v672, %v673
    %v675 = vrot.slane %v674, 1
    %v676 = vadd.f32 %v674, %v675
    %v677 = vmul.f32 %v670, 0.125
    %v678 = vmul.f32 %v676, 0.125
    %v679 = vsub.f32 %v663, %v677
    %v680 = vsub.f32 %v664, %v678
    %v681 = vmul.f32 %v679, %v679
    %v682 = vmul.f32 %v680, %v680
    %v683 = vadd.f32 %v681, %v682
    %v684 = vrot.slane %v683, 4
    %v685 = vadd.f32 %v683, %v684
    %v686 = vrot.slane %v685, 2
    %v687 = vadd.f32 %v685, %v686
    %v688 = vrot.slane %v687, 1
    %v689 = vadd.f32 %v687, %v688
    %v690 = vmul.f32 %v689, 0.125
    %v691 = vadd.f32 %v690, 1e-05
    %v692 = vrsqrt.pop %v691
    %v693 = vmul.f32 %v679, %v692
    %v694 = vmul.f32 %v680, %v692
    %v695 = vlaneseq
    %v696 = vshrl.u32 %v695, 7
    %v697 = vsub.s32 6, %v696
    %v698 = vrot.slane %v367, %v697
    %v699 = vmul.f32 %v698, %v693
    %v700 = vlaneseq
    %v701 = vshrl.u32 %v700, 7
    %v702 = vsub.s32 7, %v701
    %v703 = vrot.slane %v367, %v702
    %v704 = vmul.f32 %v703, %v694
    %v705 = vsub.f32 %v699, %v704
    %v706 = vlaneseq
    %v707 = vshrl.u32 %v706, 7
    %v708 = vsub.s32 0, %v707
    %v709 = vrot.slane %v368, %v708
    %v710 = vadd.f32 %v705, %v709
    %v711 = vmul.f32 %v698, %v694
    %v712 = vmul.f32 %v703, %v693
    %v713 = vadd.f32 %v711, %v712
    %v714 = vlaneseq
    %v715 = vshrl.u32 %v714, 7
    %v716 = vsub.s32 1, %v715
    %v717 = vrot.slane %v368, %v716
    %v718 = vadd.f32 %v713, %v717
    %719 = vst [vmem:[#allocation10] sm:$0xff] %v710
    %s720 = scalar_lea.vmem [#allocation10], 8
    %721 = vst [vmem:[%s720] sm:$0xff] %v718
    // Predicated region
    $region34: #{tpu_custom_call.1} parent=1 // pred_check
      _
    $region35: #{tpu_custom_call.1} parent=1 // pred_check_branch
      %723 = sbr.rel (0) target = $region37
    $region36: #{tpu_custom_call.1} parent=1 // pred_region
      %s725 = ssub.s32 256, 256
      %726 = vsyncadd [#allocation4], %s725
      %s727 = sshll.u32 [#allocation10], 4
      %s728 = int_to_ptr.vmem [resolvable:$true] %s727
      %733 = dma.vmem_to_hbm [thread:$0]  %s728, 256, %s4, [#allocation4], 128, 128, 8
    $region37: #{tpu_custom_call.1} parent=1 // pred_fallthru
      _
    // Predicated region
    $region38: #{tpu_custom_call.1} parent=1 // pred_check
      _
    $region39: #{tpu_custom_call.1} parent=1 // pred_check_branch
      %735 = sbr.rel (0) target = $region41
    $region40: #{tpu_custom_call.1} parent=1 // pred_region
      %736 = dma.done [#allocation4], 256
    $region41: #{tpu_custom_call.1} parent=1 // pred_fallthru
      _
    %737 = vsyncpa [#allocation3], 1
    %738 = vsyncpa [#allocation6], 1
    %739 = vsyncpa [#allocation9], 1
    %740 = vsyncpa [#allocation4], 1

</llo_original>
